<compile_context>
chip_gen: v5e
topology: v5e:2x2
jax: 0.10.0
libtpu: 0.0.40
codegen_flags: <defaults>
</compile_context>

<pallas_src>
import functools
import math

import jax
import jax.numpy as jnp
from jax import lax
from jax.experimental import pallas as pl
from jax.experimental.pallas import tpu as pltpu


# --------------------------------- kernels -----------------------------------


def _eval_kernel(w_mu_ref, b_mu_ref, x_ref, xh_ref, z_ref, o_ref, *,
                 k_size, l_tile):
    """Eval path: out = (conv1d(x, w_mu) + b_mu) * z_mu."""
    # Main tile + 128-lane halo -> contiguous (C_in, l_tile + 128) window.
    xw = jnp.concatenate([x_ref[...], xh_ref[...]], axis=-1)
    c_out = o_ref.shape[0]
    mu = jnp.zeros((c_out, l_tile), jnp.float32)
    for k in range(k_size):                 # static unroll over kernel width
        mu = mu + jnp.dot(w_mu_ref[k], xw[:, k:k + l_tile],
                          preferred_element_type=jnp.float32)
    o_ref[...] = ((mu + b_mu_ref[...]) * z_ref[...]).astype(o_ref.dtype)


def _sample_kernel(w_mu_ref, w_var_ref, b_ref, x_ref, xh_ref, z_ref, eps_ref,
                   o_ref, *, k_size, l_tile):
    """Sampling path:
         mu_act  = conv1d(x,   w_mu)         + b_mu
         var_act = conv1d(x^2, exp(w_lv))    + exp(b_lv)
         out     = mu_act*z + eps * sqrt(var_act * z^2)
    """
    xw = jnp.concatenate([x_ref[...], xh_ref[...]], axis=-1)  # (C_in, Lt+128)
    xw2 = xw * xw                      # squared on the VPU: no x^2 HBM stream
    c_out = o_ref.shape[0]
    mu = jnp.zeros((c_out, l_tile), jnp.float32)
    var = jnp.zeros((c_out, l_tile), jnp.float32)
    for k in range(k_size):                 # static unroll over kernel width
        mu = mu + jnp.dot(w_mu_ref[k], xw[:, k:k + l_tile],
                          preferred_element_type=jnp.float32)
        var = var + jnp.dot(w_var_ref[k], xw2[:, k:k + l_tile],
                            preferred_element_type=jnp.float32)
    mu = mu + b_ref[0]                      # (C_out, 1) broadcast along lanes
    var = var + b_ref[1]
    z = z_ref[...]                          # (C_out, 1) per-batch column
    o_ref[...] = (mu * z + eps_ref[...] * jnp.sqrt(var * (z * z))
                  ).astype(o_ref.dtype)


# --------------------------------- wrapper ------------------------------------


def conv1d_group_nj(x, w_mu, w_logvar, b_mu, b_logvar, z_mu, z_logvar, *,
                    sampling=True, key=None, eps_z=None, eps_out=None,
                    lane_tile=None, matmul_dtype=None):
    """Pallas implementation of Conv1dGroupNJ.forward (defaults: stride=1,
    padding=0, dilation=1, groups=1)."""
    B, C_in, L = x.shape
    C_out, C_in_w, K = w_mu.shape
    assert C_in_w == C_in, "groups != 1 not supported"
    assert K <= 129, "halo block (128 lanes) covers kernel widths up to 129"
    L_out = L - K + 1
    f32 = jnp.float32
    mm_dt = f32 if matmul_dtype is None else matmul_dtype

    # ---- lane tiling over L_out (per batch) ---------------------------------
    if lane_tile is None:
        # One tile when L_out is small; >=512 lanes already reaches ~85% of the
        # HBM roofline, so cap at 1024 to keep double-buffered VMEM modest.
        lane_tile = min(-(-L_out // 128) * 128, 1024)
    assert lane_tile % 128 == 0 and lane_tile > 0
    n_j = -(-L_out // lane_tile)
    l_out_pad = n_j * lane_tile
    l_x_pad = l_out_pad + 128            # + one 128-lane halo block

    # ---- XLA-side prep (grid-invariant / tiny arrays only) ------------------
    xp = jnp.pad(x.astype(mm_dt), ((0, 0), (0, 0), (0, l_x_pad - L)))
    w_mu_r = jnp.transpose(w_mu.astype(f32), (2, 0, 1)).astype(mm_dt)  # (K,Co,Ci)
    b_mu2 = b_mu.astype(f32).reshape(C_out, 1)

    k_z = k_eps = None
    if key is not None:
        k_z, k_eps = jax.random.split(key)

    # z per (batch, out_channel), hoisted out of the kernel.
    if sampling:
        if eps_z is None:
            assert k_z is not None, "key required to sample eps_z"
            eps_z = jax.random.normal(k_z, (B, C_out), f32)
        z_bo = (z_mu.astype(f32)[None, :]
                + eps_z.astype(f32) * jnp.exp(0.5 * z_logvar.astype(f32))[None, :])
    else:
        z_bo = jnp.broadcast_to(z_mu.astype(f32)[None, :], (B, C_out))
    z_arr = z_bo.reshape(B, C_out, 1)

    # ---- BlockSpecs ----------------------------------------------------------
    grid = (B, n_j)
    full3 = lambda shape: pl.BlockSpec(shape, lambda b, j: (0, 0, 0))
    full2 = lambda shape: pl.BlockSpec(shape, lambda b, j: (0, 0))
    x_main_spec = pl.BlockSpec((None, C_in, lane_tile), lambda b, j: (b, 0, j))
    # Halo: the 128 columns immediately after the main tile (block index in
    # units of 128 lanes).  x is padded so this block always exists.
    x_halo_spec = pl.BlockSpec(
        (None, C_in, 128), lambda b, j: (b, 0, (j + 1) * (lane_tile // 128)))
    z_spec = pl.BlockSpec((None, C_out, 1), lambda b, j: (b, 0, 0))
    out_spec = pl.BlockSpec((None, C_out, lane_tile), lambda b, j: (b, 0, j))
    out_shape = jax.ShapeDtypeStruct((B, C_out, l_out_pad), x.dtype)

    # ---- VMEM budget (explicit for v7x's smaller VMEM) -----------------------
    it = jnp.dtype(mm_dt).itemsize
    tile_bytes = (C_in * (lane_tile + 128) * it          # x main + halo
                  + C_out * lane_tile * 4                # eps (sampling)
                  + C_out * lane_tile * jnp.dtype(x.dtype).itemsize  # out
                  + C_out * 4)                           # z column
    weight_bytes = 2 * K * C_out * C_in * it + 2 * C_out * 4
    est = 4 * tile_bytes + 2 * weight_bytes              # 2x dbl-buffer, 2x headroom
    cparams = pltpu.CompilerParams(
        dimension_semantics=("parallel", "parallel"),
        vmem_limit_bytes=int(min(max(est, 32 * 1024 * 1024),
                                 64 * 1024 * 1024)))

    if not sampling:
        out = pl.pallas_call(
            functools.partial(_eval_kernel, k_size=K, l_tile=lane_tile),
            grid=grid,
            in_specs=[full3((K, C_out, C_in)), full2((C_out, 1)),
                      x_main_spec, x_halo_spec, z_spec],
            out_specs=out_spec,
            out_shape=out_shape,
            compiler_params=cparams,
        )(w_mu_r, b_mu2, xp, xp, z_arr)
    else:
        w_var_r = jnp.transpose(jnp.exp(w_logvar.astype(f32)),
                                (2, 0, 1)).astype(mm_dt)          # (K, Co, Ci)
        b_stk = jnp.stack(
            [b_mu2, jnp.exp(b_logvar.astype(f32)).reshape(C_out, 1)],
            axis=0)                                               # (2, Co, 1)
        if eps_out is None:
            assert k_eps is not None, "key required to sample eps_out"
            eps_out = jax.random.normal(k_eps, (B, C_out, L_out), f32)
        eps_pad = jnp.pad(eps_out.astype(f32),
                          ((0, 0), (0, 0), (0, l_out_pad - L_out)))
        eps_spec = pl.BlockSpec((None, C_out, lane_tile), lambda b, j: (b, 0, j))
        out = pl.pallas_call(
            functools.partial(_sample_kernel, k_size=K, l_tile=lane_tile),
            grid=grid,
            in_specs=[full3((K, C_out, C_in)), full3((K, C_out, C_in)),
                      full3((2, C_out, 1)),
                      x_main_spec, x_halo_spec, z_spec, eps_spec],
            out_specs=out_spec,
            out_shape=out_shape,
            compiler_params=cparams,
        )(w_mu_r, w_var_r, b_stk, xp, xp, z_arr, eps_pad)

    # Output already in (B, C_out, L) layout -- only crop the lane padding.
    return out[:, :, :L_out]


# --------------------------------- reference ----------------------------------


def _reference_forward(x, w_mu, w_logvar, b_mu, b_logvar, z_mu, z_logvar,
                       eps_z, eps_out, sampling=True):
    """Pure-JAX reference (mirrors the PyTorch forward)."""
    dn = ("NCH", "OIH", "NCH")
    mu_act = lax.conv_general_dilated(x, w_mu, (1,), "VALID",
                                      dimension_numbers=dn)
    mu_act = mu_act + b_mu[None, :, None]
    if not sampling:
        return mu_act * z_mu[None, :, None]
    var_act = lax.conv_general_dilated(x * x, jnp.exp(w_logvar), (1,), "VALID",
                                       dimension_numbers=dn)
    var_act = var_act + jnp.exp(b_logvar)[None, :, None]
    z = (z_mu[None, :, None]
         + eps_z[:, :, None] * jnp.exp(0.5 * z_logvar)[None, :, None])
    return mu_act * z + eps_out * jnp.sqrt(var_act * z * z)


# --------------------------------- demo / test ---------------------------------


if __name__ == "__main__":
    # Conv1dGroupNJ(in_channels=4, out_channels=8, kernel_size=3), batch=2, L=16.
    B, C_in, C_out, L, K = 2, 4, 8, 16, 3
    L_out = L - K + 1

    key = jax.random.PRNGKey(0)
    kx, kw, kz, kzl, kwl, kbl, knoise = jax.random.split(key, 7)

    # Deterministic parameter init mirroring reset_parameters():
    n = C_in * K
    stdv = 1.0 / math.sqrt(n)
    weight_mu = jax.random.uniform(kw, (C_out, C_in, K), jnp.float32,
                                   minval=-stdv, maxval=stdv)
    bias_mu = jnp.zeros((C_out,), jnp.float32)
    z_mu = 1.0 + 0.01 * jax.random.normal(kz, (C_out,), jnp.float32)
    z_logvar = -9.0 + 0.01 * jax.random.normal(kzl, (C_out,), jnp.float32)
    weight_logvar = -9.0 + 0.01 * jax.random.normal(kwl, (C_out, C_in, K),
                                                    jnp.float32)
    bias_logvar = -9.0 + 0.01 * jax.random.normal(kbl, (C_out,), jnp.float32)

    x = jax.random.normal(kx, (B, C_in, L), jnp.float32)

    # 1) Sampling path with external noise: exact check against the JAX reference.
    k1, k2 = jax.random.split(knoise)
    eps_z = jax.random.normal(k1, (B, C_out), jnp.float32)
    eps_out = jax.random.normal(k2, (B, C_out, L_out), jnp.float32)
    out = conv1d_group_nj(x, weight_mu, weight_logvar, bias_mu, bias_logvar,
                          z_mu, z_logvar, sampling=True,
                          eps_z=eps_z, eps_out=eps_out)
    out = jax.block_until_ready(out)
    ref = _reference_forward(x, weight_mu, weight_logvar, bias_mu, bias_logvar,
                             z_mu, z_logvar, eps_z, eps_out, sampling=True)
    assert out.shape == (B, C_out, L_out)
    assert jnp.allclose(out, ref, atol=1e-4, rtol=1e-3), (
        float(jnp.max(jnp.abs(out - ref))))

    # 2) Eval path (sampling=False): out = mu_act * z_mu.
    out_eval = conv1d_group_nj(x, weight_mu, weight_logvar, bias_mu,
                               bias_logvar, z_mu, z_logvar, sampling=False)
    out_eval = jax.block_until_ready(out_eval)
    ref_eval = _reference_forward(x, weight_mu, weight_logvar, bias_mu,
                                  bias_logvar, z_mu, z_logvar, None, None,
                                  sampling=False)
    assert jnp.allclose(out_eval, ref_eval, atol=1e-4, rtol=1e-3), (
        float(jnp.max(jnp.abs(out_eval - ref_eval))))

    # 3) Sampling path with noise generated in the wrapper (key path).
    out_key = conv1d_group_nj(x, weight_mu, weight_logvar, bias_mu, bias_logvar,
                              z_mu, z_logvar, sampling=True, key=knoise)
    out_key = jax.block_until_ready(out_key)
    assert out_key.shape == (B, C_out, L_out)
    assert bool(jnp.all(jnp.isfinite(out_key)))

    # 4) Multi-tile + halo path (L_out spans several 128-lane tiles).
    L2 = 300
    L2_out = L2 - K + 1
    x2 = jax.random.normal(jax.random.PRNGKey(7), (B, C_in, L2), jnp.float32)
    k3, k4 = jax.random.split(jax.random.PRNGKey(11))
    eps_z2 = jax.random.normal(k3, (B, C_out), jnp.float32)
    eps_out2 = jax.random.normal(k4, (B, C_out, L2_out), jnp.float32)
    out2 = conv1d_group_nj(x2, weight_mu, weight_logvar, bias_mu, bias_logvar,
                           z_mu, z_logvar, sampling=True,
                           eps_z=eps_z2, eps_out=eps_out2, lane_tile=128)
    out2 = jax.block_until_ready(out2)
    ref2 = _reference_forward(x2, weight_mu, weight_logvar, bias_mu,
                              bias_logvar, z_mu, z_logvar, eps_z2, eps_out2,
                              sampling=True)
    assert out2.shape == (B, C_out, L2_out)
    assert jnp.allclose(out2, ref2, atol=1e-4, rtol=1e-3), (
        float(jnp.max(jnp.abs(out2 - ref2))))

    print("KERNEL_OK")
</pallas_src>

<mosaic_0001>
module attributes {stable_mosaic.version = 11 : i64} {
  func.func @_sample_kernel(%arg0: i32, %arg1: i32, %arg2: memref<3x8x4xf32, #tpu.memory_space<vmem>>, %arg3: memref<3x8x4xf32, #tpu.memory_space<vmem>>, %arg4: memref<2x8x1xf32, #tpu.memory_space<vmem>>, %arg5: memref<1x4x128xf32, #tpu.memory_space<vmem>>, %arg6: memref<1x4x128xf32, #tpu.memory_space<vmem>>, %arg7: memref<1x8x1xf32, #tpu.memory_space<vmem>>, %arg8: memref<1x8x128xf32, #tpu.memory_space<vmem>>, %arg9: memref<1x8x128xf32, #tpu.memory_space<vmem>>) attributes {dimension_semantics = [#tpu.dimension_semantics<parallel>, #tpu.dimension_semantics<parallel>], iteration_bounds = array<i64: 2, 1>, scalar_prefetch = 0 : i64, scratch_operands = 0 : i64, tpu.core_type = #tpu.core_type<tc>, window_params = [{pipeline_mode = #tpu.pipeline_mode<synchronous>, transform_indices = @transform_0, window_bounds = array<i64: 3, 8, 4>}, {pipeline_mode = #tpu.pipeline_mode<synchronous>, transform_indices = @transform_1, window_bounds = array<i64: 3, 8, 4>}, {pipeline_mode = #tpu.pipeline_mode<synchronous>, transform_indices = @transform_2, window_bounds = array<i64: 2, 8, 1>}, {transform_indices = @transform_3, window_bounds = array<i64: 1, 4, 128>}, {transform_indices = @transform_4, window_bounds = array<i64: 1, 4, 128>}, {transform_indices = @transform_5, window_bounds = array<i64: 1, 8, 1>}, {transform_indices = @transform_6, window_bounds = array<i64: 1, 8, 128>}, {transform_indices = @transform_7, window_bounds = array<i64: 1, 8, 128>}]} {
    %c0 = arith.constant 0 : index
    %c0_0 = arith.constant 0 : index
    %c0_1 = arith.constant 0 : index
    %0 = vector.load %arg5[%c0, %c0_0, %c0_1] : memref<1x4x128xf32, #tpu.memory_space<vmem>>, vector<1x4x128xf32>
    %1 = vector.shape_cast %0 : vector<1x4x128xf32> to vector<4x128xf32>
    %c0_2 = arith.constant 0 : index
    %c0_3 = arith.constant 0 : index
    %c0_4 = arith.constant 0 : index
    %2 = vector.load %arg6[%c0_2, %c0_3, %c0_4] : memref<1x4x128xf32, #tpu.memory_space<vmem>>, vector<1x4x128xf32>
    %3 = vector.shape_cast %2 : vector<1x4x128xf32> to vector<4x128xf32>
    %4 = tpu.concatenate %1, %3 in 1 : vector<4x128xf32>, vector<4x128xf32> -> vector<4x256xf32>
    %5 = arith.mulf %4, %4 : vector<4x256xf32>
    %cst = arith.constant 0.000000e+00 : f32
    %6 = vector.broadcast %cst : f32 to vector<8x128xf32>
    %cst_5 = arith.constant 0.000000e+00 : f32
    %7 = vector.broadcast %cst_5 : f32 to vector<8x128xf32>
    %c0_6 = arith.constant 0 : index
    %c0_7 = arith.constant 0 : index
    %c0_8 = arith.constant 0 : index
    %8 = vector.load %arg2[%c0_6, %c0_7, %c0_8] : memref<3x8x4xf32, #tpu.memory_space<vmem>>, vector<1x8x4xf32>
    %9 = vector.shape_cast %8 : vector<1x8x4xf32> to vector<8x4xf32>
    %10 = vector.extract_strided_slice %4 {offsets = [0, 0], sizes = [4, 128], strides = [1, 1]} : vector<4x256xf32> to vector<4x128xf32>
    %cst_9 = arith.constant dense<0.000000e+00> : vector<8x128xf32>
    %11 = tpu.matmul %9, %10, %cst_9 {dimension_numbers = #tpu.dot_dimension_numbers<[1], [0], [0], [1], [0, 0, 1, 1], [], []>} : vector<8x4xf32>, vector<4x128xf32>, vector<8x128xf32> -> vector<8x128xf32>
    %12 = arith.addf %6, %11 : vector<8x128xf32>
    %c0_10 = arith.constant 0 : index
    %c0_11 = arith.constant 0 : index
    %c0_12 = arith.constant 0 : index
    %13 = vector.load %arg3[%c0_10, %c0_11, %c0_12] : memref<3x8x4xf32, #tpu.memory_space<vmem>>, vector<1x8x4xf32>
    %14 = vector.shape_cast %13 : vector<1x8x4xf32> to vector<8x4xf32>
    %15 = vector.extract_strided_slice %5 {offsets = [0, 0], sizes = [4, 128], strides = [1, 1]} : vector<4x256xf32> to vector<4x128xf32>
    %cst_13 = arith.constant dense<0.000000e+00> : vector<8x128xf32>
    %16 = tpu.matmul %14, %15, %cst_13 {dimension_numbers = #tpu.dot_dimension_numbers<[1], [0], [0], [1], [0, 0, 1, 1], [], []>} : vector<8x4xf32>, vector<4x128xf32>, vector<8x128xf32> -> vector<8x128xf32>
    %17 = arith.addf %7, %16 : vector<8x128xf32>
    %c1 = arith.constant 1 : index
    %c0_14 = arith.constant 0 : index
    %c0_15 = arith.constant 0 : index
    %18 = vector.load %arg2[%c1, %c0_14, %c0_15] : memref<3x8x4xf32, #tpu.memory_space<vmem>>, vector<1x8x4xf32>
    %19 = vector.shape_cast %18 : vector<1x8x4xf32> to vector<8x4xf32>
    %20 = vector.extract_strided_slice %4 {offsets = [0, 1], sizes = [4, 128], strides = [1, 1]} : vector<4x256xf32> to vector<4x128xf32>
    %cst_16 = arith.constant dense<0.000000e+00> : vector<8x128xf32>
    %21 = tpu.matmul %19, %20, %cst_16 {dimension_numbers = #tpu.dot_dimension_numbers<[1], [0], [0], [1], [0, 0, 1, 1], [], []>} : vector<8x4xf32>, vector<4x128xf32>, vector<8x128xf32> -> vector<8x128xf32>
    %22 = arith.addf %12, %21 : vector<8x128xf32>
    %c1_17 = arith.constant 1 : index
    %c0_18 = arith.constant 0 : index
    %c0_19 = arith.constant 0 : index
    %23 = vector.load %arg3[%c1_17, %c0_18, %c0_19] : memref<3x8x4xf32, #tpu.memory_space<vmem>>, vector<1x8x4xf32>
    %24 = vector.shape_cast %23 : vector<1x8x4xf32> to vector<8x4xf32>
    %25 = vector.extract_strided_slice %5 {offsets = [0, 1], sizes = [4, 128], strides = [1, 1]} : vector<4x256xf32> to vector<4x128xf32>
    %cst_20 = arith.constant dense<0.000000e+00> : vector<8x128xf32>
    %26 = tpu.matmul %24, %25, %cst_20 {dimension_numbers = #tpu.dot_dimension_numbers<[1], [0], [0], [1], [0, 0, 1, 1], [], []>} : vector<8x4xf32>, vector<4x128xf32>, vector<8x128xf32> -> vector<8x128xf32>
    %27 = arith.addf %17, %26 : vector<8x128xf32>
    %c2 = arith.constant 2 : index
    %c0_21 = arith.constant 0 : index
    %c0_22 = arith.constant 0 : index
    %28 = vector.load %arg2[%c2, %c0_21, %c0_22] : memref<3x8x4xf32, #tpu.memory_space<vmem>>, vector<1x8x4xf32>
    %29 = vector.shape_cast %28 : vector<1x8x4xf32> to vector<8x4xf32>
    %30 = vector.extract_strided_slice %4 {offsets = [0, 2], sizes = [4, 128], strides = [1, 1]} : vector<4x256xf32> to vector<4x128xf32>
    %cst_23 = arith.constant dense<0.000000e+00> : vector<8x128xf32>
    %31 = tpu.matmul %29, %30, %cst_23 {dimension_numbers = #tpu.dot_dimension_numbers<[1], [0], [0], [1], [0, 0, 1, 1], [], []>} : vector<8x4xf32>, vector<4x128xf32>, vector<8x128xf32> -> vector<8x128xf32>
    %32 = arith.addf %22, %31 : vector<8x128xf32>
    %c2_24 = arith.constant 2 : index
    %c0_25 = arith.constant 0 : index
    %c0_26 = arith.constant 0 : index
    %33 = vector.load %arg3[%c2_24, %c0_25, %c0_26] : memref<3x8x4xf32, #tpu.memory_space<vmem>>, vector<1x8x4xf32>
    %34 = vector.shape_cast %33 : vector<1x8x4xf32> to vector<8x4xf32>
    %35 = vector.extract_strided_slice %5 {offsets = [0, 2], sizes = [4, 128], strides = [1, 1]} : vector<4x256xf32> to vector<4x128xf32>
    %cst_27 = arith.constant dense<0.000000e+00> : vector<8x128xf32>
    %36 = tpu.matmul %34, %35, %cst_27 {dimension_numbers = #tpu.dot_dimension_numbers<[1], [0], [0], [1], [0, 0, 1, 1], [], []>} : vector<8x4xf32>, vector<4x128xf32>, vector<8x128xf32> -> vector<8x128xf32>
    %37 = arith.addf %27, %36 : vector<8x128xf32>
    %c0_28 = arith.constant 0 : index
    %c0_29 = arith.constant 0 : index
    %c0_30 = arith.constant 0 : index
    %38 = vector.load %arg4[%c0_28, %c0_29, %c0_30] : memref<2x8x1xf32, #tpu.memory_space<vmem>>, vector<1x8x1xf32>
    %39 = vector.shape_cast %38 : vector<1x8x1xf32> to vector<8x1xf32>
    %40 = vector.broadcast %39 : vector<8x1xf32> to vector<8x128xf32>
    %41 = arith.addf %32, %40 : vector<8x128xf32>
    %c1_31 = arith.constant 1 : index
    %c0_32 = arith.constant 0 : index
    %c0_33 = arith.constant 0 : index
    %42 = vector.load %arg4[%c1_31, %c0_32, %c0_33] : memref<2x8x1xf32, #tpu.memory_space<vmem>>, vector<1x8x1xf32>
    %43 = vector.shape_cast %42 : vector<1x8x1xf32> to vector<8x1xf32>
    %44 = vector.broadcast %43 : vector<8x1xf32> to vector<8x128xf32>
    %45 = arith.addf %37, %44 : vector<8x128xf32>
    %c0_34 = arith.constant 0 : index
    %c0_35 = arith.constant 0 : index
    %c0_36 = arith.constant 0 : index
    %46 = vector.load %arg7[%c0_34, %c0_35, %c0_36] : memref<1x8x1xf32, #tpu.memory_space<vmem>>, vector<1x8x1xf32>
    %47 = vector.shape_cast %46 : vector<1x8x1xf32> to vector<8x1xf32>
    %48 = vector.broadcast %47 : vector<8x1xf32> to vector<8x128xf32>
    %49 = arith.mulf %41, %48 : vector<8x128xf32>
    %c0_37 = arith.constant 0 : index
    %c0_38 = arith.constant 0 : index
    %c0_39 = arith.constant 0 : index
    %50 = vector.load %arg8[%c0_37, %c0_38, %c0_39] : memref<1x8x128xf32, #tpu.memory_space<vmem>>, vector<1x8x128xf32>
    %51 = vector.shape_cast %50 : vector<1x8x128xf32> to vector<8x128xf32>
    %52 = arith.mulf %47, %47 : vector<8x1xf32>
    %53 = vector.broadcast %52 : vector<8x1xf32> to vector<8x128xf32>
    %54 = arith.mulf %45, %53 : vector<8x128xf32>
    %55 = math.sqrt %54 : vector<8x128xf32>
    %56 = arith.mulf %51, %55 : vector<8x128xf32>
    %57 = arith.addf %49, %56 : vector<8x128xf32>
    %c0_40 = arith.constant 0 : index
    %c0_41 = arith.constant 0 : index
    %c0_42 = arith.constant 0 : index
    %58 = vector.load %arg9[%c0_40, %c0_41, %c0_42] : memref<1x8x128xf32, #tpu.memory_space<vmem>>, vector<1x8x128xf32>
    %59 = vector.shape_cast %58 : vector<1x8x128xf32> to vector<8x128xf32>
    %60 = vector.shape_cast %57 : vector<8x128xf32> to vector<1x8x128xf32>
    tpu.vector_store %arg9[%c0_40, %c0_41, %c0_42], %60 {strides = array<i32>} : memref<1x8x128xf32, #tpu.memory_space<vmem>>, vector<1x8x128xf32>,
    return
  }
  func.func @transform_0(%arg0: i32, %arg1: i32) -> (i32, i32, i32) {
    %c0_i32 = arith.constant 0 : i32
    %c0_i32_0 = arith.constant 0 : i32
    %c0_i32_1 = arith.constant 0 : i32
    %c0_i32_2 = arith.constant 0 : i32
    return %c0_i32, %c0_i32_0, %c0_i32_1 : i32, i32, i32
  }
  func.func @transform_1(%arg0: i32, %arg1: i32) -> (i32, i32, i32) {
    %c0_i32 = arith.constant 0 : i32
    %c0_i32_0 = arith.constant 0 : i32
    %c0_i32_1 = arith.constant 0 : i32
    %c0_i32_2 = arith.constant 0 : i32
    return %c0_i32, %c0_i32_0, %c0_i32_1 : i32, i32, i32
  }
  func.func @transform_2(%arg0: i32, %arg1: i32) -> (i32, i32, i32) {
    %c0_i32 = arith.constant 0 : i32
    %c0_i32_0 = arith.constant 0 : i32
    %c0_i32_1 = arith.constant 0 : i32
    %c0_i32_2 = arith.constant 0 : i32
    return %c0_i32, %c0_i32_0, %c0_i32_1 : i32, i32, i32
  }
  func.func @transform_3(%arg0: i32, %arg1: i32) -> (i32, i32, i32) {
    %c0_i32 = arith.constant 0 : i32
    %c0_i32_0 = arith.constant 0 : i32
    return %arg0, %c0_i32, %arg1 : i32, i32, i32
  }
  func.func @transform_4(%arg0: i32, %arg1: i32) -> (i32, i32, i32) {
    %c1_i32 = arith.constant 1 : i32
    %0 = arith.addi %arg1, %c1_i32 : i32
    %c1_i32_0 = arith.constant 1 : i32
    %1 = arith.muli %0, %c1_i32_0 : i32
    %c0_i32 = arith.constant 0 : i32
    %c0_i32_1 = arith.constant 0 : i32
    return %arg0, %c0_i32, %1 : i32, i32, i32
  }
  func.func @transform_5(%arg0: i32, %arg1: i32) -> (i32, i32, i32) {
    %c0_i32 = arith.constant 0 : i32
    %c0_i32_0 = arith.constant 0 : i32
    %c0_i32_1 = arith.constant 0 : i32
    return %arg0, %c0_i32, %c0_i32_0 : i32, i32, i32
  }
  func.func @transform_6(%arg0: i32, %arg1: i32) -> (i32, i32, i32) {
    %c0_i32 = arith.constant 0 : i32
    %c0_i32_0 = arith.constant 0 : i32
    return %arg0, %c0_i32, %arg1 : i32, i32, i32
  }
  func.func @transform_7(%arg0: i32, %arg1: i32) -> (i32, i32, i32) {
    %c0_i32 = arith.constant 0 : i32
    %c0_i32_0 = arith.constant 0 : i32
    return %arg0, %c0_i32, %arg1 : i32, i32, i32
  }
}

</mosaic_0001>

<llo_original>
// kernel: tpu_custom_call.1
$region0: #{tpu_custom_call.1}
  #allocation0 [shape = 'u32[]', space=smem, size = 0x4, offset = 0x4, fixed_abs, tag = 'smem constant byte address 0x4 - core index']
  #allocation1 [shape = 'u32[72,128]{1,0:T(1,128)}', space=vmem, size = 0x9000, scoped, tag = 'internal scratch']
  %s0 = inlined_call_operand.vmem [shape: f32[3,8,4], index: 0, kind: input, shape index: {}]
  %s1 = inlined_call_operand.vmem [shape: f32[3,8,4], index: 1, kind: input, shape index: {}]
  %s2 = inlined_call_operand.vmem [shape: f32[2,8,1], index: 2, kind: input, shape index: {}]
  %s3 = inlined_call_operand.vmem [shape: f32[2,4,256], index: 3, kind: input, shape index: {}]
  %s4 = inlined_call_operand.vmem [shape: f32[2,4,256], index: 4, kind: input, shape index: {}]
  %s5 = inlined_call_operand.vmem [shape: f32[2,8,1], index: 5, kind: input, shape index: {}]
  %s6 = inlined_call_operand.vmem [shape: f32[2,8,128], index: 6, kind: input, shape index: {}]
  %s7 = inlined_call_operand.hbm [shape: f32[2,8,128], index: 7, kind: output, shape index: {}]
  %s8 = sld [smem:[#allocation0]]
  $region61: #{tpu_custom_call.1} parent=0
    _
  %s10 = ssub.s32 1, %s8
  %s11 = scalar_select 0, %s10, %s8
  $region1: #{tpu_custom_call.1} parent=0
    #allocation2 [shape = 'u8[8192]{0}', space=vmem, size = 0x2000, scoped, tag = 'output window, operand 0']
    #allocation3 [shape = 's32[2]{0}', space=sflag, size = 0x8, scoped, tag = 'scoped memory for tpu_custom_call.1']
    %12 = vsyncpa [#allocation3], 0
    %s13 = scalar_lea.sflag [#allocation3], 1
    %14 = vsyncpa %s13, 0
    loop: start=0, step=1, limit=4
    $region2: #{tpu_custom_call.1} parent=1 // loop_pre_header
      _
    $region3: #{tpu_custom_call.1} parent=1 // loop_header
      %s16 = sphi 0, %s20
      %p17 = scmp.ge.s32.totalorder %s16, 4
      %s23 = sphi 0, %s35
      %s24 = sphi 0, %s31
      %s25 = sphi 0, %s23
      %s26 = sphi 0, %s24
      %s27 = sphi 0, %s25
      %s28 = sphi 0, %s26
      %s36 = sphi 0, %s36
      %s38 = sphi 0, %s36
      %s39 = sphi 0, %s38
      %s53 = sphi 0, %s39
      %s57 = sphi 0, %s57
      %s59 = sphi 0, %s57
      %s60 = sphi 0, %s59
      %s74 = sphi 0, %s60
      %s78 = sphi 0, %s78
      %s80 = sphi 0, %s78
      %s81 = sphi 0, %s80
      %s95 = sphi 0, %s81
      %s103 = sphi 0, %s105
      %s106 = sphi 0, %s103
      %s107 = sphi 0, %s106
      %s123 = sphi 0, %s107
      %s133 = sphi 0, %s135
      %s136 = sphi 0, %s133
      %s137 = sphi 0, %s136
      %s153 = sphi 0, %s137
      %s159 = sphi 0, %s161
      %s162 = sphi 0, %s159
      %s163 = sphi 0, %s162
      %s179 = sphi 0, %s163
      %s187 = sphi 0, %s189
      %s190 = sphi 0, %s187
      %s191 = sphi 0, %s190
      %s207 = sphi 0, %s191
      %s215 = sphi 0, %s217
      %s218 = sphi 0, %s215
      %s219 = sphi 0, %s218
      %s235 = sphi 0, %s219
    $region4: #{tpu_custom_call.1} parent=1 // loop_header_branch
      %19 = sbr.rel (%p17) target = $region8
    $region5: #{tpu_custom_call.1} parent=1 // loop_body
      %s21 = ssub.s32 %s16, 1
      %s22 = ssub.s32 %s16, 2
      %s29 = sadd.s32 1, %s24
      %p30 = scmp.ge.s32.totalorder %s29, 1
      %s31 = scalar_select %p30, 0, %s29
      %s32 = sadd.s32 1, %s23
      %s33 = scalar_select %p30, %s32, %s23
      %p34 = scmp.ge.s32.totalorder %s33, 2
      %s35 = scalar_select %p34, 0, %s33
      %s37 = sadd.s32 %s36, 1
      %p40 = scmp.eq.s32.totalorder %s16, 1
      %p41 = scmp.ne.s32.totalorder %s36, %s38
      %p42 = scmp.eq.s32.totalorder %s16, 0
      %p43 = por %p41, %p42
      %p44 = scmp.ne.s32.totalorder %s36, %s38
      %p45 = scmp.eq.s32.totalorder %s21, 1
      %p46 = por %p44, %p45
      %p47 = scmp.ne.s32.totalorder %s38, %s39
      %p48 = scmp.eq.s32.totalorder %s21, 0
      %p49 = por %p47, %p48
      %p50 = scmp.ne.s32.totalorder %s38, %s39
      %p51 = scmp.eq.s32.totalorder %s22, 1
      %p52 = por %p50, %p51
      %p54 = scmp.ne.s32.totalorder %s39, %s53
      %p55 = scmp.eq.s32.totalorder %s22, 0
      %p56 = por %p54, %p55
      %s58 = sadd.s32 %s57, 1
      %p61 = scmp.eq.s32.totalorder %s16, 1
      %p62 = scmp.ne.s32.totalorder %s57, %s59
      %p63 = scmp.eq.s32.totalorder %s16, 0
      %p64 = por %p62, %p63
      %p65 = scmp.ne.s32.totalorder %s57, %s59
      %p66 = scmp.eq.s32.totalorder %s21, 1
      %p67 = por %p65, %p66
      %p68 = scmp.ne.s32.totalorder %s59, %s60
      %p69 = scmp.eq.s32.totalorder %s21, 0
      %p70 = por %p68, %p69
      %p71 = scmp.ne.s32.totalorder %s59, %s60
      %p72 = scmp.eq.s32.totalorder %s22, 1
      %p73 = por %p71, %p72
      %p75 = scmp.ne.s32.totalorder %s60, %s74
      %p76 = scmp.eq.s32.totalorder %s22, 0
      %p77 = por %p75, %p76
      %s79 = sadd.s32 %s78, 1
      %p82 = scmp.eq.s32.totalorder %s16, 1
      %p83 = scmp.ne.s32.totalorder %s78, %s80
      %p84 = scmp.eq.s32.totalorder %s16, 0
      %p85 = por %p83, %p84
      %p86 = scmp.ne.s32.totalorder %s78, %s80
      %p87 = scmp.eq.s32.totalorder %s21, 1
      %p88 = por %p86, %p87
      %p89 = scmp.ne.s32.totalorder %s80, %s81
      %p90 = scmp.eq.s32.totalorder %s21, 0
      %p91 = por %p89, %p90
      %p92 = scmp.ne.s32.totalorder %s80, %s81
      %p93 = scmp.eq.s32.totalorder %s22, 1
      %p94 = por %p92, %p93
      %p96 = scmp.ne.s32.totalorder %s81, %s95
      %p97 = scmp.eq.s32.totalorder %s22, 0
      %p98 = por %p96, %p97
      %s99 = ssub.s32 %s23, %s35
      %s100 = ssub.s32 %s24, %s31
      %s101 = sor.u32 %s99, %s100
      %p102 = scmp.eq.s32.totalorder %s101, 0
      %s104 = sadd.s32 %s103, 1
      %s105 = scalar_select %p102, %s103, %s104
      %p108 = pneg %p102
      %p109 = scmp.eq.s32.totalorder %s16, 1
      %p110 = por %p108, %p109
      %p111 = scmp.ne.s32.totalorder %s103, %s106
      %p112 = scmp.eq.s32.totalorder %s16, 0
      %p113 = por %p111, %p112
      %p114 = scmp.ne.s32.totalorder %s103, %s106
      %p115 = scmp.eq.s32.totalorder %s21, 1
      %p116 = por %p114, %p115
      %p117 = scmp.ne.s32.totalorder %s106, %s107
      %p118 = scmp.eq.s32.totalorder %s21, 0
      %p119 = por %p117, %p118
      %p120 = scmp.ne.s32.totalorder %s106, %s107
      %p121 = scmp.eq.s32.totalorder %s22, 1
      %p122 = por %p120, %p121
      %p124 = scmp.ne.s32.totalorder %s107, %s123
      %p125 = scmp.eq.s32.totalorder %s22, 0
      %p126 = por %p124, %p125
      %s127 = sadd.s32 %s24, 1
      %s128 = sadd.s32 %s31, 1
      %s129 = ssub.s32 %s23, %s35
      %s130 = ssub.s32 %s127, %s128
      %s131 = sor.u32 %s129, %s130
      %p132 = scmp.eq.s32.totalorder %s131, 0
      %s134 = sadd.s32 %s133, 1
      %s135 = scalar_select %p132, %s133, %s134
      %p138 = pneg %p132
      %p139 = scmp.eq.s32.totalorder %s16, 1
      %p140 = por %p138, %p139
      %p141 = scmp.ne.s32.totalorder %s133, %s136
      %p142 = scmp.eq.s32.totalorder %s16, 0
      %p143 = por %p141, %p142
      %p144 = scmp.ne.s32.totalorder %s133, %s136
      %p145 = scmp.eq.s32.totalorder %s21, 1
      %p146 = por %p144, %p145
      %p147 = scmp.ne.s32.totalorder %s136, %s137
      %p148 = scmp.eq.s32.totalorder %s21, 0
      %p149 = por %p147, %p148
      %p150 = scmp.ne.s32.totalorder %s136, %s137
      %p151 = scmp.eq.s32.totalorder %s22, 1
      %p152 = por %p150, %p151
      %p154 = scmp.ne.s32.totalorder %s137, %s153
      %p155 = scmp.eq.s32.totalorder %s22, 0
      %p156 = por %p154, %p155
      %s157 = ssub.s32 %s23, %s35
      %p158 = scmp.eq.s32.totalorder %s157, 0
      %s160 = sadd.s32 %s159, 1
      %s161 = scalar_select %p158, %s159, %s160
      %p164 = pneg %p158
      %p165 = scmp.eq.s32.totalorder %s16, 1
      %p166 = por %p164, %p165
      %p167 = scmp.ne.s32.totalorder %s159, %s162
      %p168 = scmp.eq.s32.totalorder %s16, 0
      %p169 = por %p167, %p168
      %p170 = scmp.ne.s32.totalorder %s159, %s162
      %p171 = scmp.eq.s32.totalorder %s21, 1
      %p172 = por %p170, %p171
      %p173 = scmp.ne.s32.totalorder %s162, %s163
      %p174 = scmp.eq.s32.totalorder %s21, 0
      %p175 = por %p173, %p174
      %p176 = scmp.ne.s32.totalorder %s162, %s163
      %p177 = scmp.eq.s32.totalorder %s22, 1
      %p178 = por %p176, %p177
      %p180 = scmp.ne.s32.totalorder %s163, %s179
      %p181 = scmp.eq.s32.totalorder %s22, 0
      %p182 = por %p180, %p181
      %s183 = ssub.s32 %s23, %s35
      %s184 = ssub.s32 %s24, %s31
      %s185 = sor.u32 %s183, %s184
      %p186 = scmp.eq.s32.totalorder %s185, 0
      %s188 = sadd.s32 %s187, 1
      %s189 = scalar_select %p186, %s187, %s188
      %p192 = pneg %p186
      %p193 = scmp.eq.s32.totalorder %s16, 1
      %p194 = por %p192, %p193
      %p195 = scmp.ne.s32.totalorder %s187, %s190
      %p196 = scmp.eq.s32.totalorder %s16, 0
      %p197 = por %p195, %p196
      %p198 = scmp.ne.s32.totalorder %s187, %s190
      %p199 = scmp.eq.s32.totalorder %s21, 1
      %p200 = por %p198, %p199
      %p201 = scmp.ne.s32.totalorder %s190, %s191
      %p202 = scmp.eq.s32.totalorder %s21, 0
      %p203 = por %p201, %p202
      %p204 = scmp.ne.s32.totalorder %s190, %s191
      %p205 = scmp.eq.s32.totalorder %s22, 1
      %p206 = por %p204, %p205
      %p208 = scmp.ne.s32.totalorder %s191, %s207
      %p209 = scmp.eq.s32.totalorder %s22, 0
      %p210 = por %p208, %p209
      %s211 = ssub.s32 %s23, %s35
      %s212 = ssub.s32 %s24, %s31
      %s213 = sor.u32 %s211, %s212
      %p214 = scmp.eq.s32.totalorder %s213, 0
      %s216 = sadd.s32 %s215, 1
      %s217 = scalar_select %p214, %s215, %s216
      %p220 = pneg %p214
      %p221 = scmp.eq.s32.totalorder %s16, 1
      %p222 = por %p220, %p221
      %p223 = scmp.ne.s32.totalorder %s215, %s218
      %p224 = scmp.eq.s32.totalorder %s16, 0
      %p225 = por %p223, %p224
      %p226 = scmp.ne.s32.totalorder %s215, %s218
      %p227 = scmp.eq.s32.totalorder %s21, 1
      %p228 = por %p226, %p227
      %p229 = scmp.ne.s32.totalorder %s218, %s219
      %p230 = scmp.eq.s32.totalorder %s21, 0
      %p231 = por %p229, %p230
      %p232 = scmp.ne.s32.totalorder %s218, %s219
      %p233 = scmp.eq.s32.totalorder %s22, 1
      %p234 = por %p232, %p233
      %p236 = scmp.ne.s32.totalorder %s219, %s235
      %p237 = scmp.eq.s32.totalorder %s22, 0
      %p238 = por %p236, %p237
      %p239 = scmp.le.s32.totalorder 1, %s16
      %p240 = scmp.lt.s32.totalorder %s16, 3
      %p241 = pnand %p239, %p240
      %p242 = pneg %p241
      // Predicated region
      $region9: #{tpu_custom_call.1} parent=5 // pred_check
        _
      $region10: #{tpu_custom_call.1} parent=5 // pred_check_branch
        %244 = sbr.rel (%p241) target = $region12
      $region11: #{tpu_custom_call.1} parent=5 // pred_region
        %s245 = ssub.s32 %s16, 1
        // Predicated region
        $region13: #{tpu_custom_call.1} parent=11 // pred_check
          %p246 = pneg %p49
        $region14: #{tpu_custom_call.1} parent=11 // pred_check_branch
          %248 = sbr.rel (%p246) target = $region16
        $region15: #{tpu_custom_call.1} parent=11 // pred_region
          _
        $region16: #{tpu_custom_call.1} parent=11 // pred_fallthru
          _
        // Predicated region
        $region17: #{tpu_custom_call.1} parent=11 // pred_check
          %p249 = pneg %p70
        $region18: #{tpu_custom_call.1} parent=11 // pred_check_branch
          %251 = sbr.rel (%p249) target = $region20
        $region19: #{tpu_custom_call.1} parent=11 // pred_region
          _
        $region20: #{tpu_custom_call.1} parent=11 // pred_fallthru
          _
        // Predicated region
        $region21: #{tpu_custom_call.1} parent=11 // pred_check
          %p252 = pneg %p91
        $region22: #{tpu_custom_call.1} parent=11 // pred_check_branch
          %254 = sbr.rel (%p252) target = $region24
        $region23: #{tpu_custom_call.1} parent=11 // pred_region
          _
        $region24: #{tpu_custom_call.1} parent=11 // pred_fallthru
          _
      $region12: #{tpu_custom_call.1} parent=5 // pred_fallthru
        _
      %p255 = scmp.lt.s32.totalorder %s16, 2
      // Predicated region
      $region25: #{tpu_custom_call.1} parent=5 // pred_check
        %p256 = pneg %p255
      $region26: #{tpu_custom_call.1} parent=5 // pred_check_branch
        %258 = sbr.rel (%p256) target = $region28
      $region27: #{tpu_custom_call.1} parent=5 // pred_region
        // Predicated region
        $region29: #{tpu_custom_call.1} parent=27 // pred_check
          %p259 = pneg %p113
        $region30: #{tpu_custom_call.1} parent=27 // pred_check_branch
          %261 = sbr.rel (%p259) target = $region32
        $region31: #{tpu_custom_call.1} parent=27 // pred_region
          %p262 = scmp.lt.s32.totalorder %s23, 1
          %s263 = scalar_select %p262, %s23, 1
          %p264 = scmp.lt.s32.totalorder %s24, 1
          %s265 = scalar_select %p264, %s24, 1
          %s266 = smul.addr %s263, 2
          %s267 = sadd.s32 %s265, %s266
          %s268 = smul.addr %s267, 4
          %s269 = scalar_lea.vmem %s3, %s268
        $region32: #{tpu_custom_call.1} parent=27 // pred_fallthru
          _
        // Predicated region
        $region33: #{tpu_custom_call.1} parent=27 // pred_check
          %p270 = pneg %p143
        $region34: #{tpu_custom_call.1} parent=27 // pred_check_branch
          %272 = sbr.rel (%p270) target = $region36
        $region35: #{tpu_custom_call.1} parent=27 // pred_region
          %s273 = sadd.s32 %s24, 1
          %p274 = scmp.lt.s32.totalorder %s23, 1
          %s275 = scalar_select %p274, %s23, 1
          %p276 = scmp.lt.s32.totalorder %s273, 1
          %s277 = scalar_select %p276, %s273, 1
          %s278 = smul.addr %s275, 2
          %s279 = sadd.s32 %s277, %s278
          %s280 = smul.addr %s279, 4
          %s281 = scalar_lea.vmem %s4, %s280
          %s282 = sadd.s32 %s24, 1
        $region36: #{tpu_custom_call.1} parent=27 // pred_fallthru
          _
        // Predicated region
        $region37: #{tpu_custom_call.1} parent=27 // pred_check
          %p283 = pneg %p169
        $region38: #{tpu_custom_call.1} parent=27 // pred_check_branch
          %285 = sbr.rel (%p283) target = $region40
        $region39: #{tpu_custom_call.1} parent=27 // pred_region
          %p286 = scmp.lt.s32.totalorder %s23, 1
          %s287 = scalar_select %p286, %s23, 1
          %s288 = smul.addr %s287, 8
          %s289 = scalar_lea.vmem %s5, %s288
        $region40: #{tpu_custom_call.1} parent=27 // pred_fallthru
          _
        // Predicated region
        $region41: #{tpu_custom_call.1} parent=27 // pred_check
          %p290 = pneg %p197
        $region42: #{tpu_custom_call.1} parent=27 // pred_check_branch
          %292 = sbr.rel (%p290) target = $region44
        $region43: #{tpu_custom_call.1} parent=27 // pred_region
          %p293 = scmp.lt.s32.totalorder %s23, 1
          %s294 = scalar_select %p293, %s23, 1
          %p295 = scmp.lt.s32.totalorder %s24, 0
          %s296 = scalar_select %p295, %s24, 0
          %s297 = sadd.s32 %s296, %s294
          %s298 = smul.addr %s297, 8
          %s299 = scalar_lea.vmem %s6, %s298
        $region44: #{tpu_custom_call.1} parent=27 // pred_fallthru
          _
      $region28: #{tpu_custom_call.1} parent=5 // pred_fallthru
        _
      %p300 = scmp.le.s32.totalorder 1, %s16
      %p301 = scmp.lt.s32.totalorder %s16, 3
      %p302 = pnand %p300, %p301
      %p303 = pneg %p302
      // Predicated region
      $region45: #{tpu_custom_call.1} parent=5 // pred_check
        _
      $region46: #{tpu_custom_call.1} parent=5 // pred_check_branch
        %305 = sbr.rel (%p302) target = $region48
      $region47: #{tpu_custom_call.1} parent=5 // pred_region
        %s306 = ssub.s32 %s16, 1
        %p307 = pneg %p49
        %p308 = pneg %p46
        %p309 = pneg %p70
        %p310 = pneg %p67
        %p311 = pneg %p91
        %p312 = pneg %p88
        %p313 = scmp.lt.s32.totalorder %s25, 1
        %s314 = scalar_select %p313, %s25, 1
        %p315 = scmp.lt.s32.totalorder %s26, 1
        %s316 = scalar_select %p315, %s26, 1
        %s317 = smul.addr %s314, 2
        %s318 = sadd.s32 %s316, %s317
        %s319 = smul.addr %s318, 4
        %s320 = scalar_lea.vmem %s3, %s319
        %p321 = pneg %p119
        %p322 = pneg %p116
        %s323 = sadd.s32 %s26, 1
        %p324 = scmp.lt.s32.totalorder %s25, 1
        %s325 = scalar_select %p324, %s25, 1
        %p326 = scmp.lt.s32.totalorder %s323, 1
        %s327 = scalar_select %p326, %s323, 1
        %s328 = smul.addr %s325, 2
        %s329 = sadd.s32 %s327, %s328
        %s330 = smul.addr %s329, 4
        %s331 = scalar_lea.vmem %s4, %s330
        %p332 = pneg %p149
        %p333 = pneg %p146
        %p334 = scmp.lt.s32.totalorder %s25, 1
        %s335 = scalar_select %p334, %s25, 1
        %s336 = smul.addr %s335, 8
        %s337 = scalar_lea.vmem %s5, %s336
        %p338 = pneg %p175
        %p339 = pneg %p172
        %p340 = scmp.lt.s32.totalorder %s25, 1
        %s341 = scalar_select %p340, %s25, 1
        %p342 = scmp.lt.s32.totalorder %s26, 0
        %s343 = scalar_select %p342, %s26, 0
        %s344 = sadd.s32 %s343, %s341
        %s345 = smul.addr %s344, 8
        %s346 = scalar_lea.vmem %s6, %s345
        %p347 = pneg %p203
        %p348 = pneg %p200
        %p349 = pneg %p231
        %p350 = pneg %p228
        %s351 = sand.u32 %s218, 1
        %s352 = scalar_lea.sflag [#allocation3], %s351
        %s353 = sand.u32 %s218, 1
        %s354 = smul.addr %s353, 8
        %s355 = scalar_lea.vmem [#allocation2], %s354
        %p356 = scmp.lt.s32.totalorder %s25, 1
        %s357 = scalar_select %p356, %s25, 1
        %p358 = scmp.lt.s32.totalorder %s26, 1
        %s359 = scalar_select %p358, %s26, 1
        %s360 = smul.addr %s357, 2
        %s361 = sadd.s32 %s359, %s360
        %s362 = smul.addr %s361, 4
        %s363 = scalar_lea.vmem %s3, %s362
        %s364 = sadd.s32 %s26, 1
        %p365 = scmp.lt.s32.totalorder %s25, 1
        %s366 = scalar_select %p365, %s25, 1
        %p367 = scmp.lt.s32.totalorder %s364, 1
        %s368 = scalar_select %p367, %s364, 1
        %s369 = smul.addr %s366, 2
        %s370 = sadd.s32 %s368, %s369
        %s371 = smul.addr %s370, 4
        %s372 = scalar_lea.vmem %s4, %s371
        %s373 = sadd.s32 %s26, 1
        %p374 = scmp.lt.s32.totalorder %s25, 1
        %s375 = scalar_select %p374, %s25, 1
        %s376 = smul.addr %s375, 8
        %s377 = scalar_lea.vmem %s5, %s376
        %p378 = scmp.lt.s32.totalorder %s25, 1
        %s379 = scalar_select %p378, %s25, 1
        %p380 = scmp.lt.s32.totalorder %s26, 0
        %s381 = scalar_select %p380, %s26, 0
        %s382 = sadd.s32 %s381, %s379
        %s383 = smul.addr %s382, 8
        %s384 = scalar_lea.vmem %s6, %s383
        %v385 = vld [vmem:[%s363] sm:$0xf]
        %v386 = vld [vmem:[%s372] sm:$0xf]
        %v387 = vmul.f32 %v385, %v385
        %v388 = vmul.f32 %v386, %v386
        %v389 = vld [vmem:[%s0] sm:$0xff]
        %v390 = vld [vmem:[%s1] sm:$0xff]
        %s391 = scalar_lea.vmem %s0, 8
        %v392 = vld [vmem:[%s391] sm:$0xff]
        %395 = vrot.lane.b32.xlu0 %v385, 127
        %v396 = vpop.permute.xlu0 %395
        %397 = vrot.lane.b32.xlu0 %v386, 127
        %v398 = vpop.permute.xlu0 %397
        %vm399 = vcmask 1039360
        %v400 = vsel %vm399, %v396, %v398
        %vm401 = vcmask 31744
        %v403 = vsel %vm401, %v392, 0
        %vm405 = vcmask 1043456
        %v406 = vsel %vm405, %v400, 0
        %408 = vmatpush.msra.mxu0 0.0
        %409 = vmatpush.msra.mxu0 0.0
        %410 = vmatpush.msra.mxu0 0.0
        %411 = vmatpush.msra.mxu0 0.0
        %412 = vmatpush.msra.mxu0 0.0
        %413 = vmatpush.msra.mxu0 0.0
        %414 = vmatpush.msra.mxu0 0.0
        %415 = vmatpush.msra.mxu0 0.0
        %416 = vmatpush.msra.mxu0 0.0
        %417 = vmatpush.msra.mxu0 0.0
        %418 = vmatpush.msra.mxu0 0.0
        %419 = vmatpush.msra.mxu0 0.0
        %420 = vmatpush.msra.mxu0 0.0
        %421 = vmatpush.msra.mxu0 0.0
        %422 = vmatpush.msra.mxu0 0.0
        %423 = vmatpush.msra.mxu0 %v406
        %424 = vmatmul.f32.gmra.mxu0 %v403
        %v425 = vpop.f32.mrf.mxu0
        %v426 = vadd.f32 0.0, %v425
        %427 = vdwg.mxu0
        %v429 = vsel %vm401, %v389, 0
        %v431 = vsel %vm405, %v385, 0
        %433 = vmatpush.msra.mxu0 0.0
        %434 = vmatpush.msra.mxu0 0.0
        %435 = vmatpush.msra.mxu0 0.0
        %436 = vmatpush.msra.mxu0 0.0
        %437 = vmatpush.msra.mxu0 0.0
        %438 = vmatpush.msra.mxu0 0.0
        %439 = vmatpush.msra.mxu0 0.0
        %440 = vmatpush.msra.mxu0 0.0
        %441 = vmatpush.msra.mxu0 0.0
        %442 = vmatpush.msra.mxu0 0.0
        %443 = vmatpush.msra.mxu0 0.0
        %444 = vmatpush.msra.mxu0 0.0
        %445 = vmatpush.msra.mxu0 0.0
        %446 = vmatpush.msra.mxu0 0.0
        %447 = vmatpush.msra.mxu0 0.0
        %448 = vmatpush.msra.mxu0 %v431
        %449 = vmatmul.f32.gmra.mxu0 %v429
        %v450 = vpop.f32.mrf.mxu0
        %v451 = vadd.f32 %v426, %v450
        %452 = vdwg.mxu0
        %s453 = scalar_lea.vmem %s1, 8
        %v454 = vld [vmem:[%s453] sm:$0xff]
        %457 = vrot.lane.b32.xlu0 %v387, 127
        %v458 = vpop.permute.xlu0 %457
        %459 = vrot.lane.b32.xlu0 %v388, 127
        %v460 = vpop.permute.xlu0 %459
        %v461 = vsel %vm399, %v458, %v460
        %v463 = vsel %vm401, %v454, 0
        %v465 = vsel %vm405, %v461, 0
        %467 = vmatpush.msra.mxu0 0.0
        %468 = vmatpush.msra.mxu0 0.0
        %469 = vmatpush.msra.mxu0 0.0
        %470 = vmatpush.msra.mxu0 0.0
        %471 = vmatpush.msra.mxu0 0.0
        %472 = vmatpush.msra.mxu0 0.0
        %473 = vmatpush.msra.mxu0 0.0
        %474 = vmatpush.msra.mxu0 0.0
        %475 = vmatpush.msra.mxu0 0.0
        %476 = vmatpush.msra.mxu0 0.0
        %477 = vmatpush.msra.mxu0 0.0
        %478 = vmatpush.msra.mxu0 0.0
        %479 = vmatpush.msra.mxu0 0.0
        %480 = vmatpush.msra.mxu0 0.0
        %481 = vmatpush.msra.mxu0 0.0
        %482 = vmatpush.msra.mxu0 %v465
        %483 = vmatmul.f32.gmra.mxu0 %v463
        %v484 = vpop.f32.mrf.mxu0
        %v485 = vadd.f32 0.0, %v484
        %486 = vdwg.mxu0
        %v488 = vsel %vm401, %v390, 0
        %v490 = vsel %vm405, %v387, 0
        %492 = vmatpush.msra.mxu0 0.0
        %493 = vmatpush.msra.mxu0 0.0
        %494 = vmatpush.msra.mxu0 0.0
        %495 = vmatpush.msra.mxu0 0.0
        %496 = vmatpush.msra.mxu0 0.0
        %497 = vmatpush.msra.mxu0 0.0
        %498 = vmatpush.msra.mxu0 0.0
        %499 = vmatpush.msra.mxu0 0.0
        %500 = vmatpush.msra.mxu0 0.0
        %501 = vmatpush.msra.mxu0 0.0
        %502 = vmatpush.msra.mxu0 0.0
        %503 = vmatpush.msra.mxu0 0.0
        %504 = vmatpush.msra.mxu0 0.0
        %505 = vmatpush.msra.mxu0 0.0
        %506 = vmatpush.msra.mxu0 0.0
        %507 = vmatpush.msra.mxu0 %v490
        %508 = vmatmul.f32.gmra.mxu0 %v488
        %v509 = vpop.f32.mrf.mxu0
        %v510 = vadd.f32 %v485, %v509
        %511 = vdwg.mxu0
        %s512 = scalar_lea.vmem %s0, 16
        %v513 = vld [vmem:[%s512] sm:$0xff]
        %514 = vrot.lane.b32.xlu0 %v385, 126
        %v515 = vpop.permute.xlu0 %514
        %516 = vrot.lane.b32.xlu0 %v386, 126
        %v517 = vpop.permute.xlu0 %516
        %vm518 = vcmask 1031168
        %v519 = vsel %vm518, %v515, %v517
        %v521 = vsel %vm401, %v513, 0
        %v523 = vsel %vm405, %v519, 0
        %525 = vmatpush.msra.mxu0 0.0
        %526 = vmatpush.msra.mxu0 0.0
        %527 = vmatpush.msra.mxu0 0.0
        %528 = vmatpush.msra.mxu0 0.0
        %529 = vmatpush.msra.mxu0 0.0
        %530 = vmatpush.msra.mxu0 0.0
        %531 = vmatpush.msra.mxu0 0.0
        %532 = vmatpush.msra.mxu0 0.0
        %533 = vmatpush.msra.mxu0 0.0
        %534 = vmatpush.msra.mxu0 0.0
        %535 = vmatpush.msra.mxu0 0.0
        %536 = vmatpush.msra.mxu0 0.0
        %537 = vmatpush.msra.mxu0 0.0
        %538 = vmatpush.msra.mxu0 0.0
        %539 = vmatpush.msra.mxu0 0.0
        %540 = vmatpush.msra.mxu0 %v523
        %541 = vmatmul.f32.gmra.mxu0 %v521
        %v542 = vpop.f32.mrf.mxu0
        %v543 = vadd.f32 0.0, %v542
        %544 = vdwg.mxu0
        %v545 = vadd.f32 %v451, %v543
        %s546 = scalar_lea.vmem %s1, 16
        %v547 = vld [vmem:[%s546] sm:$0xff]
        %548 = vrot.lane.b32.xlu0 %v387, 126
        %v549 = vpop.permute.xlu0 %548
        %550 = vrot.lane.b32.xlu0 %v388, 126
        %v551 = vpop.permute.xlu0 %550
        %v552 = vsel %vm518, %v549, %v551
        %v554 = vsel %vm401, %v547, 0
        %v556 = vsel %vm405, %v552, 0
        %558 = vmatpush.msra.mxu0 0.0
        %559 = vmatpush.msra.mxu0 0.0
        %560 = vmatpush.msra.mxu0 0.0
        %561 = vmatpush.msra.mxu0 0.0
        %562 = vmatpush.msra.mxu0 0.0
        %563 = vmatpush.msra.mxu0 0.0
        %564 = vmatpush.msra.mxu0 0.0
        %565 = vmatpush.msra.mxu0 0.0
        %566 = vmatpush.msra.mxu0 0.0
        %567 = vmatpush.msra.mxu0 0.0
        %568 = vmatpush.msra.mxu0 0.0
        %569 = vmatpush.msra.mxu0 0.0
        %570 = vmatpush.msra.mxu0 0.0
        %571 = vmatpush.msra.mxu0 0.0
        %572 = vmatpush.msra.mxu0 0.0
        %573 = vmatpush.msra.mxu0 %v556
        %574 = vmatmul.f32.gmra.mxu0 %v554
        %v575 = vpop.f32.mrf.mxu0
        %v576 = vadd.f32 0.0, %v575
        %577 = vdwg.mxu0
        %v578 = vadd.f32 %v510, %v576
        %v579 = vld [vmem:[%s2] sm:$0xff]
        %581 = vset.pattern.permute.xlu0 0
        %582 = vperm.xlu0 %581, %v579
        %v583 = vpop.permute.xlu0 %582
        %v585 = vadd.f32 %v545, %v583
        %s586 = scalar_lea.vmem %s2, 8
        %v587 = vld [vmem:[%s586] sm:$0xff]
        %589 = vset.pattern.permute.xlu0 0
        %590 = vperm.xlu0 %589, %v587
        %v591 = vpop.permute.xlu0 %590
        %v593 = vadd.f32 %v578, %v591
        %v594 = vld [vmem:[%s377] sm:$0xff]
        %596 = vset.pattern.permute.xlu0 0
        %597 = vperm.xlu0 %596, %v594
        %v598 = vpop.permute.xlu0 %597
        %v600 = vmul.f32 %v585, %v598
        %v601 = vld [vmem:[%s384] sm:$0xff]
        %v602 = vmul.f32 %v594, %v594
        %604 = vset.pattern.permute.xlu0 0
        %605 = vperm.xlu0 %604, %v602
        %v606 = vpop.permute.xlu0 %605
        %v608 = vmul.f32 %v593, %v606
        %v609 = vrsqrt.pop %v608
        %v610 = vmul.f32 %v609, %v608
        %v611 = vmul.f32 %v610, %v609
        %v612 = vmul.f32 0.5, %v611
        %v613 = vsub.f32 1.5, %v612
        %v614 = vmul.f32 %v609, %v613
        %v615 = vmul.f32 %v608, %v614
        %vm616 = vcmp.eq.f32.partialorder %v608, inf
        %v617 = vsel %vm616, %v608, %v615
        %vm618 = vcmp.eq.f32.partialorder %v608, 0.0
        %v619 = vand.u32 %v608, 2147483648
        %v620 = vsel %vm618, %v619, %v617
        %v621 = vmul.f32 %v601, %v620
        %v622 = vadd.f32 %v600, %v621
        %623 = vst [vmem:[%s355] sm:$0xff] %v622
        %s624 = sand.u32 %s218, 1
        %s625 = scalar_lea.sflag [#allocation3], %s624
        %s626 = sand.u32 %s218, 1
        %s627 = smul.addr %s626, 8
        %s628 = scalar_lea.vmem [#allocation2], %s627
        // Predicated region
        $region49: #{tpu_custom_call.1} parent=47 // pred_check
          %p629 = pneg %p228
        $region50: #{tpu_custom_call.1} parent=47 // pred_check_branch
          %631 = sbr.rel (%p629) target = $region52
        $region51: #{tpu_custom_call.1} parent=47 // pred_region
          %633 = vsyncadd %s625, 0
          %s634 = sadd.s32 %s26, %s25
          %s635 = smul.addr %s634, 8
          %s636 = scalar_lea.hbm %s7, %s635
          %s638 = sshll.u32 %s628, 4
          %s639 = int_to_ptr.vmem [resolvable:$true] %s638
          %s640 = sshll.u32 %s636, 4
          %s641 = int_to_ptr.hbm [resolvable:$true] %s640
          %643 = dma.vmem_to_hbm [thread:$0]  %s639, 128, %s641, %s625
        $region52: #{tpu_custom_call.1} parent=47 // pred_fallthru
          _
      $region48: #{tpu_custom_call.1} parent=5 // pred_fallthru
        _
      %p644 = scmp.le.s32.totalorder 2, %s16
      // Predicated region
      $region53: #{tpu_custom_call.1} parent=5 // pred_check
        %p645 = pneg %p644
      $region54: #{tpu_custom_call.1} parent=5 // pred_check_branch
        %647 = sbr.rel (%p645) target = $region56
      $region55: #{tpu_custom_call.1} parent=5 // pred_region
        %s648 = ssub.s32 %s16, 2
        // Predicated region
        $region57: #{tpu_custom_call.1} parent=55 // pred_check
          %p649 = pneg %p234
        $region58: #{tpu_custom_call.1} parent=55 // pred_check_branch
          %651 = sbr.rel (%p649) target = $region60
        $region59: #{tpu_custom_call.1} parent=55 // pred_region
          %s652 = sand.u32 %s219, 1
          %s653 = scalar_lea.sflag [#allocation3], %s652
          %s654 = sand.u32 %s219, 1
          %s655 = smul.addr %s654, 8
          %s656 = scalar_lea.vmem [#allocation2], %s655
          %658 = dma.done %s653, 128
        $region60: #{tpu_custom_call.1} parent=55 // pred_fallthru
          _
      $region56: #{tpu_custom_call.1} parent=5 // pred_fallthru
        _
    $region6: #{tpu_custom_call.1} parent=1 // loop_footer
      %s20 = sadd.s32 1, %s16
    $region7: #{tpu_custom_call.1} parent=1 // loop_footer_branch
      %15 = sbr.rel target = $region3
    $region8: #{tpu_custom_call.1} parent=1 // loop_exit
      _
    %659 = vsyncpa [#allocation3], 1
    %s660 = scalar_lea.sflag [#allocation3], 1
    %661 = vsyncpa %s660, 1

</llo_original>
